<compile_context>
chip_gen: v6e
topology: v6e:2x2x1
jax: 0.10.0
libtpu: 0.0.40
codegen_flags: <defaults>
</compile_context>

<pallas_src>
import functools

import numpy as np
import jax
import jax.numpy as jnp
from jax.experimental import pallas as pl
from jax.experimental.pallas import tpu as pltpu

_MIB = 1024 * 1024
_NEG_BIG = -1e30


def _round_up(x, m):
    return ((x + m - 1) // m) * m


def _cdiv(a, b):
    return (a + b - 1) // b


def _pad2d(x, rows, cols, value=0):
    pr, pc = rows - x.shape[0], cols - x.shape[1]
    if pr == 0 and pc == 0:
        return x
    return jnp.pad(x, ((0, pr), (0, pc)), constant_values=value)


def _vmem_limit(needed_bytes):
    # Generous headroom above the estimate, never below 32 MiB, capped at the
    # largest physical VMEM (128 MiB on v5e/v6e; on v7x the cap is still a
    # legal upper bound - the estimate itself stays well under 64 MiB here).
    return int(min(128 * _MIB, max(32 * _MIB, 2 * needed_bytes)))


def _resident_spec(block_shape, index_map):
    """Constant-index-map (grid-resident) block: single-buffered if supported."""
    if hasattr(pl, "Buffered"):
        try:
            return pl.BlockSpec(block_shape, index_map,
                                pipeline_mode=pl.Buffered(1))
        except TypeError:
            pass
    return pl.BlockSpec(block_shape, index_map)


# --------------------------------------------------------------------------
# Phase 1: per-class sum accumulation over N-tiles (per split).
# --------------------------------------------------------------------------
def _proto_accum_kernel(lab_ref, emb_ref, sum_ref):
    i = pl.program_id(1)  # N-tile axis (last, "arbitrary")

    @pl.when(i == 0)
    def _init():
        sum_ref[...] = jnp.zeros_like(sum_ref)

    emb = emb_ref[...]                                   # (tn, Dp) f32
    lab = lab_ref[...]                                   # (tn, 1)  int32
    tn = emb.shape[0]
    kp = sum_ref.shape[0]

    # Per-tile one-hot built in-kernel; padded rows (label -1) are all-zero.
    k_iota = jax.lax.broadcasted_iota(jnp.int32, (tn, kp), 1)
    oh = (k_iota == lab).astype(jnp.float32)             # (tn, Kp)

    # sums[k, d] += sum_n oh[n, k] * emb[n, d]   (contract n; no transpose)
    # Kept f32 x f32 for exact sums (v5e pays multi-pass MXU cost; documented).
    sum_ref[...] += jax.lax.dot_general(
        oh, emb,
        dimension_numbers=(((0,), (0,)), ((), ())),
        preferred_element_type=jnp.float32)


# --------------------------------------------------------------------------
# Phase 2: cosine sims + masked logsumexp -> per-row losses.
# --------------------------------------------------------------------------
def _proto_loss_kernel(lab_ref, emb_ref, pro_ref, bias_ref, out_ref, *,
                       inv_t, use_static_bound, mxu_dtype):
    emb = emb_ref[...].astype(jnp.float32)               # (tn, Dp)
    lab = lab_ref[...]                                    # (tn, 1)
    tn = emb.shape[0]
    kp = bias_ref.shape[1]

    # Unit-normalize embeddings (rsqrt -> EUP slot); matches max(||e||, 1e-8).
    esq = jnp.sum(emb * emb, axis=-1, keepdims=True)
    emb_u = emb * jax.lax.rsqrt(jnp.maximum(esq, jnp.float32(1e-16)))

    # sims[n, k] = <emb_u[n], pro_u[k]>  (contract last dims, no transpose).
    # Prototypes arrive already unit-normalized and already in mxu_dtype.
    sims = jax.lax.dot_general(
        emb_u.astype(mxu_dtype), pro_ref[...],
        dimension_numbers=(((1,), (1,)), ((), ())),
        preferred_element_type=jnp.float32)               # (tn, Kp) f32

    inv_t = jnp.float32(inv_t)
    inv_t2 = inv_t * inv_t

    # Reference quirk: logits divided by T twice inside the logsumexp.
    # bias_ref holds 0 for present classes, -1e30 for absent/padded classes.
    logits = sims * inv_t2 + bias_ref[...]                # (tn, Kp)

    k_iota = jax.lax.broadcasted_iota(jnp.int32, (tn, kp), 1)
    is_pos = k_iota == lab
    pos = jnp.sum(jnp.where(is_pos, sims, jnp.float32(0.0)),
                  axis=-1, keepdims=True)                 # (tn, 1)

    if use_static_bound:
        # |sims| <= 1 => logits <= 1/T^2; absent classes underflow to exp=0.
        m = inv_t2
    else:
        m = jnp.max(logits, axis=-1, keepdims=True)
    lse = m + jnp.log(jnp.sum(jnp.exp(logits - m), axis=-1, keepdims=True))

    valid = (lab >= 0).astype(jnp.float32)                # exclude padded rows
    out_ref[...] = (lse - pos * inv_t) * valid            # (tn, 1)


# --------------------------------------------------------------------------
# Wrapper
# --------------------------------------------------------------------------
def proto_loss(embeddings, families, num_classes, temperature=0.5,
               tile_n=1024, num_core_splits=2, mxu_dtype=jnp.bfloat16):
    """Pallas implementation of ProtoLoss.forward.

    embeddings: (N, D) float array
    families:   (N,)  int labels in [0, num_classes)
    mxu_dtype:  dtype for the streamed phase-2 embeddings / prototypes and the
                sims matmul (bf16 fast path on v6e/v7x; pass jnp.float32 for
                exact f32, recommended for small temperatures).
    """
    embeddings = jnp.asarray(embeddings, jnp.float32)
    n, d = embeddings.shape
    if n == 0:
        return jnp.float32(0.0)
    fams = jnp.asarray(families, jnp.int32).reshape(n)

    kp = _round_up(max(int(num_classes), 1), 128)   # lane-dense class axis
    dp = _round_up(d, 128)                          # lane-dense feature axis
    tn = _round_up(min(int(tile_n), _round_up(n, 8)), 8)
    tiles_total = _cdiv(n, tn)
    num_splits = max(1, min(int(num_core_splits), tiles_total))
    tiles_per_split = _cdiv(tiles_total, num_splits)
    n_pad = num_splits * tiles_per_split * tn

    # ---- tiny host-side prep: padding (only if needed), counts, masks ----
    emb_f32 = _pad2d(embeddings, n_pad, dp)                       # phase-1 stream
    lab_p = _pad2d(fams.reshape(n, 1), n_pad, 1, value=-1)
    if jnp.dtype(mxu_dtype) == jnp.dtype(jnp.float32):
        emb_p2 = emb_f32                                          # phase-2 stream
    else:
        emb_p2 = emb_f32.astype(mxu_dtype)

    counts = jnp.zeros((kp,), jnp.float32).at[fams].add(1.0)
    present = counts > 0.0
    neg_bias = jnp.where(present, jnp.float32(0.0),
                         jnp.float32(_NEG_BIG)).reshape(1, kp)
    # Reference skips samples with no negatives: < 2 families present -> 0.
    multi = (jnp.sum(present.astype(jnp.float32)) > 1.5).astype(jnp.float32)

    row_map = lambda c, i: (c * tiles_per_split + i, 0)
    esz = jnp.dtype(mxu_dtype).itemsize

    # ---- phase 1: per-split prototype sums ----
    p1_need = 2 * tn * dp * 4 + 2 * tn * 128 * 4 + 2 * kp * dp * 4
    partial_sums = pl.pallas_call(
        _proto_accum_kernel,
        out_shape=jax.ShapeDtypeStruct((num_splits, kp, dp), jnp.float32),
        grid=(num_splits, tiles_per_split),
        in_specs=[
            pl.BlockSpec((tn, 1), row_map),       # labels
            pl.BlockSpec((tn, dp), row_map),      # embeddings (f32, exact)
        ],
        out_specs=pl.BlockSpec((None, kp, dp), lambda c, i: (c, 0, 0)),
        compiler_params=pltpu.CompilerParams(
            dimension_semantics=("parallel", "arbitrary"),
            vmem_limit_bytes=_vmem_limit(p1_need)),
    )(lab_p, emb_f32)

    # Cross-split reduce + unit-normalization + the single cast to mxu_dtype
    # (cosine sim is scale-invariant, so normalizing the sums == normalizing
    # the means; absent/padded classes have sum 0 and stay exactly zero).
    sums = jnp.sum(partial_sums, axis=0)                          # (Kp, Dp) f32
    ssq = jnp.sum(sums * sums, axis=-1, keepdims=True)
    pro_u = (sums * jax.lax.rsqrt(jnp.maximum(ssq, jnp.float32(1e-16)))
             ).astype(mxu_dtype)

    # ---- phase 2: per-row losses ----
    inv_t = 1.0 / float(temperature)
    use_static_bound = (2.0 * inv_t * inv_t) <= 60.0   # guard exp underflow
    kern2 = functools.partial(_proto_loss_kernel, inv_t=inv_t,
                              use_static_bound=use_static_bound,
                              mxu_dtype=mxu_dtype)
    p2_need = (2 * tn * dp * esz + 2 * tn * 128 * 4 + 2 * kp * dp * esz
               + 2 * 8 * kp * 4 + 2 * tn * 128 * 4)
    params2 = pltpu.CompilerParams(
        dimension_semantics=("parallel", "arbitrary"),
        vmem_limit_bytes=_vmem_limit(p2_need))

    def _run_phase2(resident):
        return pl.pallas_call(
            kern2,
            out_shape=jax.ShapeDtypeStruct((n_pad, 1), jnp.float32),
            grid=(num_splits, tiles_per_split),
            in_specs=[
                pl.BlockSpec((tn, 1), row_map),             # labels
                pl.BlockSpec((tn, dp), row_map),            # embeddings (mxu_dtype)
                resident((kp, dp), lambda c, i: (0, 0)),    # prototypes (resident)
                resident((1, kp), lambda c, i: (0, 0)),     # presence bias (resident)
            ],
            out_specs=pl.BlockSpec((tn, 1), row_map),
            compiler_params=params2,
        )(lab_p, emb_p2, pro_u, neg_bias)

    try:
        per_row = _run_phase2(_resident_spec)
    except Exception:
        # Single-buffered resident blocks rejected by this Pallas build:
        # fall back to the default double-buffered BlockSpec.
        per_row = _run_phase2(pl.BlockSpec)

    # Exact f32 reduction outside the kernel (no running-scalar drift),
    # the "skip all if <2 families" flag, and the 1/N scaling.
    return (jnp.sum(per_row) * multi) / jnp.float32(n)


# --------------------------------------------------------------------------
# Reference (loop-for-loop port of the PyTorch forward) for verification.
# --------------------------------------------------------------------------
def _reference_numpy(embeddings, families, temperature=0.5):
    emb = np.asarray(embeddings, np.float64)
    fams = list(np.asarray(families).tolist())
    n = len(emb)
    if n == 0:
        return 0.0
    protos = {}
    for fam in set(fams):
        mask = np.array([f == fam for f in fams])
        if mask.any():
            protos[fam] = emb[mask].mean(0)

    def cos(a, b, eps=1e-8):
        return float(np.dot(a, b) /
                     (max(np.linalg.norm(a), eps) * max(np.linalg.norm(b), eps)))

    loss = 0.0
    for e, fam in zip(emb, fams):
        if fam not in protos:
            continue
        pos = cos(e, protos[fam])
        negs = [cos(e, p) for g, p in protos.items() if g != fam]
        if not negs:
            continue
        logits = np.array([pos] + negs) / temperature
        logits = logits / temperature  # second division, as in the reference
        m = logits.max()
        lse = m + np.log(np.exp(logits - m).sum())
        loss += -pos / temperature + lse
    return loss / n


if __name__ == "__main__":
    key = jax.random.PRNGKey(0)
    k1, k2, k3, k4 = jax.random.split(key, 4)

    # ---- test 1: small shape, default bf16 MXU / bf16-stream fast path ----
    N, D, K = 8, 32, 3
    emb = jax.random.normal(k1, (N, D), dtype=jnp.float32)
    fam = jax.random.randint(k2, (N,), 0, K, dtype=jnp.int32)
    loss_bf16 = jax.block_until_ready(
        proto_loss(emb, fam, num_classes=K, temperature=0.5))
    ref = _reference_numpy(np.asarray(emb), np.asarray(fam), 0.5)
    assert np.allclose(float(loss_bf16), ref, rtol=1e-1, atol=1e-1), \
        (float(loss_bf16), ref)

    # ---- test 2: exact f32 path, multi-tile + dual-split grid, padding ----
    N2, D2, K2 = 24, 32, 5
    emb2 = jax.random.normal(k3, (N2, D2), dtype=jnp.float32)
    fam2 = jax.random.randint(k4, (N2,), 0, K2, dtype=jnp.int32)
    loss_f32 = jax.block_until_ready(
        proto_loss(emb2, fam2, num_classes=K2, temperature=0.5,
                   tile_n=8, num_core_splits=2, mxu_dtype=jnp.float32))
    ref2 = _reference_numpy(np.asarray(emb2), np.asarray(fam2), 0.5)
    assert np.allclose(float(loss_f32), ref2, rtol=1e-4, atol=1e-4), \
        (float(loss_f32), ref2)

    # ---- test 3: single-family edge case (reference skips all -> 0) ----
    fam_single = jnp.zeros((N,), jnp.int32)
    loss_single = jax.block_until_ready(
        proto_loss(emb, fam_single, num_classes=K, temperature=0.5,
                   mxu_dtype=jnp.float32))
    ref_single = _reference_numpy(np.asarray(emb), np.asarray(fam_single), 0.5)
    assert np.allclose(float(loss_single), ref_single, atol=1e-6), \
        (float(loss_single), ref_single)

    print("KERNEL_OK")
</pallas_src>

<mosaic_0001>
module attributes {stable_mosaic.version = 11 : i64} {
  func.func @_proto_accum_kernel(%arg0: i32, %arg1: i32, %arg2: memref<8x1xi32, #tpu.memory_space<vmem>>, %arg3: memref<8x128xf32, #tpu.memory_space<vmem>>, %arg4: memref<1x128x128xf32, #tpu.memory_space<vmem>>) attributes {dimension_semantics = [#tpu.dimension_semantics<parallel>, #tpu.dimension_semantics<arbitrary>], iteration_bounds = array<i64: 1, 1>, scalar_prefetch = 0 : i64, scratch_operands = 0 : i64, tpu.core_type = #tpu.core_type<tc>, window_params = [{transform_indices = @transform_0, window_bounds = array<i64: 8, 1>}, {transform_indices = @transform_1, window_bounds = array<i64: 8, 128>}, {transform_indices = @transform_2, window_bounds = array<i64: 1, 128, 128>}]} {
    %c0_i32 = arith.constant 0 : i32
    %0 = arith.cmpi eq, %arg1, %c0_i32 : i32
    %1 = arith.extui %0 : i1 to i32
    %c0_i32_0 = arith.constant 0 : i32
    %2 = arith.cmpi ne, %1, %c0_i32_0 : i32
    scf.if %2 {
      %cst_10 = arith.constant 0.000000e+00 : f32
      %17 = vector.broadcast %cst_10 : f32 to vector<128x128xf32>
      %c0_11 = arith.constant 0 : index
      %c0_12 = arith.constant 0 : index
      %c0_13 = arith.constant 0 : index
      %18 = vector.load %arg4[%c0_11, %c0_12, %c0_13] : memref<1x128x128xf32, #tpu.memory_space<vmem>>, vector<1x128x128xf32>
      %19 = vector.shape_cast %18 : vector<1x128x128xf32> to vector<128x128xf32>
      %20 = vector.shape_cast %17 : vector<128x128xf32> to vector<1x128x128xf32>
      tpu.vector_store %arg4[%c0_11, %c0_12, %c0_13], %20 {strides = array<i32>} : memref<1x128x128xf32, #tpu.memory_space<vmem>>, vector<1x128x128xf32>,
    } else {
    }
    %c0 = arith.constant 0 : index
    %c0_1 = arith.constant 0 : index
    %3 = vector.load %arg3[%c0, %c0_1] : memref<8x128xf32, #tpu.memory_space<vmem>>, vector<8x128xf32>
    %c0_2 = arith.constant 0 : index
    %c0_3 = arith.constant 0 : index
    %4 = vector.load %arg2[%c0_2, %c0_3] : memref<8x1xi32, #tpu.memory_space<vmem>>, vector<8x1xi32>
    %5 = tpu.iota {dimensions = array<i32: 1>} : vector<8x128xi32>
    %6 = vector.broadcast %4 : vector<8x1xi32> to vector<8x128xi32>
    %7 = arith.cmpi eq, %5, %6 : vector<8x128xi32>
    %8 = arith.extui %7 : vector<8x128xi1> to vector<8x128xi32>
    %9 = arith.sitofp %8 : vector<8x128xi32> to vector<8x128xf32>
    %c0_4 = arith.constant 0 : index
    %c0_5 = arith.constant 0 : index
    %c0_6 = arith.constant 0 : index
    %10 = vector.load %arg4[%c0_4, %c0_5, %c0_6] : memref<1x128x128xf32, #tpu.memory_space<vmem>>, vector<1x128x128xf32>
    %11 = vector.shape_cast %10 : vector<1x128x128xf32> to vector<128x128xf32>
    %cst = arith.constant dense<0.000000e+00> : vector<128x128xf32>
    %12 = tpu.matmul %9, %3, %cst {dimension_numbers = #tpu.dot_dimension_numbers<[0], [0], [1], [1], [0, 1, 1, 1], [], []>} : vector<8x128xf32>, vector<8x128xf32>, vector<128x128xf32> -> vector<128x128xf32>
    %13 = arith.addf %11, %12 : vector<128x128xf32>
    %c0_7 = arith.constant 0 : index
    %c0_8 = arith.constant 0 : index
    %c0_9 = arith.constant 0 : index
    %14 = vector.load %arg4[%c0_7, %c0_8, %c0_9] : memref<1x128x128xf32, #tpu.memory_space<vmem>>, vector<1x128x128xf32>
    %15 = vector.shape_cast %14 : vector<1x128x128xf32> to vector<128x128xf32>
    %16 = vector.shape_cast %13 : vector<128x128xf32> to vector<1x128x128xf32>
    tpu.vector_store %arg4[%c0_7, %c0_8, %c0_9], %16 {strides = array<i32>} : memref<1x128x128xf32, #tpu.memory_space<vmem>>, vector<1x128x128xf32>,
    return
  }
  func.func @transform_0(%arg0: i32, %arg1: i32) -> (i32, i32) {
    %c1_i32 = arith.constant 1 : i32
    %0 = arith.muli %arg0, %c1_i32 : i32
    %1 = arith.addi %0, %arg1 : i32
    %c0_i32 = arith.constant 0 : i32
    %c0_i32_0 = arith.constant 0 : i32
    return %1, %c0_i32 : i32, i32
  }
  func.func @transform_1(%arg0: i32, %arg1: i32) -> (i32, i32) {
    %c1_i32 = arith.constant 1 : i32
    %0 = arith.muli %arg0, %c1_i32 : i32
    %1 = arith.addi %0, %arg1 : i32
    %c0_i32 = arith.constant 0 : i32
    %c0_i32_0 = arith.constant 0 : i32
    return %1, %c0_i32 : i32, i32
  }
  func.func @transform_2(%arg0: i32, %arg1: i32) -> (i32, i32, i32) {
    %c0_i32 = arith.constant 0 : i32
    %c0_i32_0 = arith.constant 0 : i32
    %c0_i32_1 = arith.constant 0 : i32
    return %arg0, %c0_i32, %c0_i32_0 : i32, i32, i32
  }
}

</mosaic_0001>

<llo_original>
// kernel: tpu_custom_call.1
$region0: #{tpu_custom_call.1}
  #allocation0 [shape = 'u32[]', space=smem, size = 0x4, offset = 0x4, fixed_abs, tag = 'smem constant byte address 0x4 - core index']
  #allocation1 [shape = 'u32[144,128]{1,0:T(1,128)}', space=vmem, size = 0x12000, scoped, tag = 'internal scratch']
  %s0 = inlined_call_operand.vmem [shape: s32[8,1], index: 0, kind: input, shape index: {}]
  %s1 = inlined_call_operand.vmem [shape: f32[8,128], index: 1, kind: input, shape index: {}]
  %s2 = inlined_call_operand.hbm [shape: f32[1,128,128], index: 2, kind: output, shape index: {}]
  %s3 = sld [smem:[#allocation0]]
  $region22: #{tpu_custom_call.1} parent=0
    _
  %s5 = ssub.s32 1, %s3
  %s6 = scalar_select 0, %s5, %s3
  $region1: #{tpu_custom_call.1} parent=0
    #allocation2 [shape = 'u8[65536]{0}', space=vmem, size = 0x10000, scoped, tag = 'output window, operand 0, single buffered']
    #allocation3 [shape = 's32[1]{0}', space=sflag, size = 0x4, scoped, tag = 'scoped memory for tpu_custom_call.1']
    %7 = vsyncpa [#allocation3], 0
    // Predicated region
    $region2: #{tpu_custom_call.1} parent=1 // pred_check
      _
    $region3: #{tpu_custom_call.1} parent=1 // pred_check_branch
      %9 = sbr.rel (0) target = $region5
    $region4: #{tpu_custom_call.1} parent=1 // pred_region
      %s10 = sadd.s32 0, 0
      %p11 = scmp.lt.s32.totalorder %s10, 0
      %s12 = scalar_select %p11, %s10, 0
      %s13 = smul.addr %s12, 8
      %s14 = scalar_lea.vmem %s0, %s13
      %s15 = sadd.s32 0, 0
    $region5: #{tpu_custom_call.1} parent=1 // pred_fallthru
      _
    // Predicated region
    $region6: #{tpu_custom_call.1} parent=1 // pred_check
      _
    $region7: #{tpu_custom_call.1} parent=1 // pred_check_branch
      %17 = sbr.rel (0) target = $region9
    $region8: #{tpu_custom_call.1} parent=1 // pred_region
      %s18 = sadd.s32 0, 0
      %p19 = scmp.lt.s32.totalorder %s18, 0
      %s20 = scalar_select %p19, %s18, 0
      %s21 = smul.addr %s20, 8
      %s22 = scalar_lea.vmem %s1, %s21
      %s23 = sadd.s32 0, 0
    $region9: #{tpu_custom_call.1} parent=1 // pred_fallthru
      _
    %s24 = sadd.s32 0, 0
    %p25 = scmp.lt.s32.totalorder %s24, 0
    %s26 = scalar_select %p25, %s24, 0
    %s27 = smul.addr %s26, 8
    %s28 = scalar_lea.vmem %s0, %s27
    %s29 = sadd.s32 0, 0
    %p30 = scmp.lt.s32.totalorder %s29, 0
    %s31 = scalar_select %p30, %s29, 0
    %s32 = smul.addr %s31, 8
    %s33 = scalar_lea.vmem %s1, %s32
    %s34 = sadd.s32 0, 0
    %p35 = scmp.lt.s32.totalorder %s34, 0
    %s36 = scalar_select %p35, %s34, 0
    %s37 = smul.addr %s36, 8
    %s38 = scalar_lea.vmem %s0, %s37
    %s39 = sadd.s32 0, 0
    %s40 = sadd.s32 0, 0
    %p41 = scmp.lt.s32.totalorder %s40, 0
    %s42 = scalar_select %p41, %s40, 0
    %s43 = smul.addr %s42, 8
    %s44 = scalar_lea.vmem %s1, %s43
    %s45 = sadd.s32 0, 0
    %p46 = scmp.eq.s32.totalorder 0, 0
    // Predicated region
    $region10: #{tpu_custom_call.1} parent=1 // pred_check
      %p47 = pneg %p46
    $region11: #{tpu_custom_call.1} parent=1 // pred_check_branch
      %49 = sbr.rel (%p47) target = $region13
    $region12: #{tpu_custom_call.1} parent=1 // pred_region
      %50 = vst [vmem:[#allocation2] sm:$0xff] 0.0
      %51 = vst [vmem:[#allocation2 + $0x8] sm:$0xff] 0.0
      %52 = vst [vmem:[#allocation2 + $0x10] sm:$0xff] 0.0
      %53 = vst [vmem:[#allocation2 + $0x18] sm:$0xff] 0.0
      %54 = vst [vmem:[#allocation2 + $0x20] sm:$0xff] 0.0
      %55 = vst [vmem:[#allocation2 + $0x28] sm:$0xff] 0.0
      %56 = vst [vmem:[#allocation2 + $0x30] sm:$0xff] 0.0
      %57 = vst [vmem:[#allocation2 + $0x38] sm:$0xff] 0.0
      %58 = vst [vmem:[#allocation2 + $0x40] sm:$0xff] 0.0
      %59 = vst [vmem:[#allocation2 + $0x48] sm:$0xff] 0.0
      %60 = vst [vmem:[#allocation2 + $0x50] sm:$0xff] 0.0
      %61 = vst [vmem:[#allocation2 + $0x58] sm:$0xff] 0.0
      %62 = vst [vmem:[#allocation2 + $0x60] sm:$0xff] 0.0
      %63 = vst [vmem:[#allocation2 + $0x68] sm:$0xff] 0.0
      %64 = vst [vmem:[#allocation2 + $0x70] sm:$0xff] 0.0
      %65 = vst [vmem:[#allocation2 + $0x78] sm:$0xff] 0.0
    $region13: #{tpu_custom_call.1} parent=1 // pred_fallthru
      _
    %v66 = vld [vmem:[%s44] sm:$0xff]
    %v67 = vld [vmem:[%s38] sm:$0xff]
    %v68 = vlaneseq
    %v69 = vand.u32 %v68, 127
    %70 = vset.pattern.permute.xlu0 0
    %71 = vperm.xlu0 %70, %v67
    %v72 = vpop.permute.xlu0 %71
    %vm73 = vcmp.eq.s32.totalorder %v69, %v72
    %v74 = vsel %vm73, 1, 0
    %v75 = vcvt.s32.f32 %v74
    %v76 = vld [vmem:[#allocation2] sm:$0xff]
    %v77 = vld [vmem:[#allocation2 + $0x8] sm:$0xff]
    %v78 = vld [vmem:[#allocation2 + $0x10] sm:$0xff]
    %v79 = vld [vmem:[#allocation2 + $0x18] sm:$0xff]
    %v80 = vld [vmem:[#allocation2 + $0x20] sm:$0xff]
    %v81 = vld [vmem:[#allocation2 + $0x28] sm:$0xff]
    %v82 = vld [vmem:[#allocation2 + $0x30] sm:$0xff]
    %v83 = vld [vmem:[#allocation2 + $0x38] sm:$0xff]
    %v84 = vld [vmem:[#allocation2 + $0x40] sm:$0xff]
    %v85 = vld [vmem:[#allocation2 + $0x48] sm:$0xff]
    %v86 = vld [vmem:[#allocation2 + $0x50] sm:$0xff]
    %v87 = vld [vmem:[#allocation2 + $0x58] sm:$0xff]
    %v88 = vld [vmem:[#allocation2 + $0x60] sm:$0xff]
    %v89 = vld [vmem:[#allocation2 + $0x68] sm:$0xff]
    %v90 = vld [vmem:[#allocation2 + $0x70] sm:$0xff]
    %v91 = vld [vmem:[#allocation2 + $0x78] sm:$0xff]
    %92 = vxpose.xlu0.b32.start [1/16] %v75, 128
    %93 = vxpose.xlu0.b32.cont [2/16] 0.0, 128
    %94 = vxpose.xlu0.b32.cont [3/16] 0.0, 128
    %95 = vxpose.xlu0.b32.cont [4/16] 0.0, 128
    %96 = vxpose.xlu0.b32.cont [5/16] 0.0, 128
    %97 = vxpose.xlu0.b32.cont [6/16] 0.0, 128
    %98 = vxpose.xlu0.b32.cont [7/16] 0.0, 128
    %99 = vxpose.xlu0.b32.cont [8/16] 0.0, 128
    %100 = vxpose.xlu0.b32.cont [9/16] 0.0, 128
    %101 = vxpose.xlu0.b32.cont [10/16] 0.0, 128
    %102 = vxpose.xlu0.b32.cont [11/16] 0.0, 128
    %103 = vxpose.xlu0.b32.cont [12/16] 0.0, 128
    %104 = vxpose.xlu0.b32.cont [13/16] 0.0, 128
    %105 = vxpose.xlu0.b32.cont [14/16] 0.0, 128
    %106 = vxpose.xlu0.b32.cont [15/16] 0.0, 128
    %107 = vxpose.xlu0.b32.end [16/16] 0.0, 128
    %v108 = vpop.trf.xlu0
    %v109 = vpop.trf.xlu0
    %v110 = vpop.trf.xlu0
    %v111 = vpop.trf.xlu0
    %v112 = vpop.trf.xlu0
    %v113 = vpop.trf.xlu0
    %v114 = vpop.trf.xlu0
    %v115 = vpop.trf.xlu0
    %v116 = vpop.trf.xlu0
    %v117 = vpop.trf.xlu0
    %v118 = vpop.trf.xlu0
    %v119 = vpop.trf.xlu0
    %v120 = vpop.trf.xlu0
    %v121 = vpop.trf.xlu0
    %v122 = vpop.trf.xlu0
    %v123 = vpop.trf.xlu0
    %vm124 = vcmask 64512
    %v126 = vsel %vm124, %v108, 0
    %v129 = vsel %vm124, %v109, 0
    %v132 = vsel %vm124, %v110, 0
    %v135 = vsel %vm124, %v111, 0
    %v138 = vsel %vm124, %v112, 0
    %v141 = vsel %vm124, %v113, 0
    %v144 = vsel %vm124, %v114, 0
    %v147 = vsel %vm124, %v115, 0
    %v150 = vsel %vm124, %v116, 0
    %v153 = vsel %vm124, %v117, 0
    %v156 = vsel %vm124, %v118, 0
    %v159 = vsel %vm124, %v119, 0
    %v162 = vsel %vm124, %v120, 0
    %v165 = vsel %vm124, %v121, 0
    %v168 = vsel %vm124, %v122, 0
    %v171 = vsel %vm124, %v123, 0
    %173 = vmatprep.subr.mxu0 0.0
    %174 = vmatpush1.msra.mxu0 0.0
    %175 = vmatprep.subr.mxu0 0.0
    %176 = vmatpush1.msra.mxu0 0.0
    %177 = vmatprep.subr.mxu0 0.0
    %178 = vmatpush1.msra.mxu0 0.0
    %179 = vmatprep.subr.mxu0 0.0
    %180 = vmatpush1.msra.mxu0 0.0
    %181 = vmatprep.subr.mxu0 0.0
    %182 = vmatpush1.msra.mxu0 0.0
    %183 = vmatprep.subr.mxu0 0.0
    %184 = vmatpush1.msra.mxu0 0.0
    %185 = vmatprep.subr.mxu0 0.0
    %186 = vmatpush1.msra.mxu0 0.0
    %187 = vmatprep.subr.mxu0 0.0
    %188 = vmatpush1.msra.mxu0 0.0
    %189 = vmatprep.subr.mxu0 0.0
    %190 = vmatpush1.msra.mxu0 0.0
    %191 = vmatprep.subr.mxu0 0.0
    %192 = vmatpush1.msra.mxu0 0.0
    %193 = vmatprep.subr.mxu0 0.0
    %194 = vmatpush1.msra.mxu0 0.0
    %195 = vmatprep.subr.mxu0 0.0
    %196 = vmatpush1.msra.mxu0 0.0
    %197 = vmatprep.subr.mxu0 0.0
    %198 = vmatpush1.msra.mxu0 0.0
    %199 = vmatprep.subr.mxu0 0.0
    %200 = vmatpush1.msra.mxu0 0.0
    %201 = vmatprep.subr.mxu0 0.0
    %202 = vmatpush1.msra.mxu0 0.0
    %203 = vmatprep.subr.mxu0 0.0
    %204 = vmatpush1.msra.mxu0 %v66
    %205 = vmatprep.subr.mxu0 0.0
    %206 = vmatpush2.msra.mxu0 0.0
    %207 = vmatprep.subr.mxu0 0.0
    %208 = vmatpush2.msra.mxu0 0.0
    %209 = vmatprep.subr.mxu0 0.0
    %210 = vmatpush2.msra.mxu0 0.0
    %211 = vmatprep.subr.mxu0 0.0
    %212 = vmatpush2.msra.mxu0 0.0
    %213 = vmatprep.subr.mxu0 0.0
    %214 = vmatpush2.msra.mxu0 0.0
    %215 = vmatprep.subr.mxu0 0.0
    %216 = vmatpush2.msra.mxu0 0.0
    %217 = vmatprep.subr.mxu0 0.0
    %218 = vmatpush2.msra.mxu0 0.0
    %219 = vmatprep.subr.mxu0 0.0
    %220 = vmatpush2.msra.mxu0 0.0
    %221 = vmatprep.subr.mxu0 0.0
    %222 = vmatpush2.msra.mxu0 0.0
    %223 = vmatprep.subr.mxu0 0.0
    %224 = vmatpush2.msra.mxu0 0.0
    %225 = vmatprep.subr.mxu0 0.0
    %226 = vmatpush2.msra.mxu0 0.0
    %227 = vmatprep.subr.mxu0 0.0
    %228 = vmatpush2.msra.mxu0 0.0
    %229 = vmatprep.subr.mxu0 0.0
    %230 = vmatpush2.msra.mxu0 0.0
    %231 = vmatprep.subr.mxu0 0.0
    %232 = vmatpush2.msra.mxu0 0.0
    %233 = vmatprep.subr.mxu0 0.0
    %234 = vmatpush2.msra.mxu0 0.0
    %235 = vmatprep.subr.mxu0 0.0
    %236 = vmatpush2.msra.mxu0 0.0
    %237 = vmatprep.mubr.f32.mxu0 0.0
    %238 = vmatmul.mubr.f32.gmra.mxu0 %v126
    %v239 = vpop.f32.mrf.mxu0
    %v240 = vadd.f32 0.0, %v239
    %v241 = vpop.f32.mrf.mxu0
    %242 = vmatprep.mubr.f32.mxu0 0.0
    %243 = vmatmul.mubr.f32.gmra.mxu0 %v129
    %v244 = vpop.f32.mrf.mxu0
    %v245 = vadd.f32 0.0, %v244
    %v246 = vpop.f32.mrf.mxu0
    %247 = vmatprep.mubr.f32.mxu0 0.0
    %248 = vmatmul.mubr.f32.gmra.mxu0 %v132
    %v249 = vpop.f32.mrf.mxu0
    %v250 = vadd.f32 0.0, %v249
    %v251 = vpop.f32.mrf.mxu0
    %252 = vmatprep.mubr.f32.mxu0 0.0
    %253 = vmatmul.mubr.f32.gmra.mxu0 %v135
    %v254 = vpop.f32.mrf.mxu0
    %v255 = vadd.f32 0.0, %v254
    %v256 = vpop.f32.mrf.mxu0
    %257 = vmatprep.mubr.f32.mxu0 0.0
    %258 = vmatmul.mubr.f32.gmra.mxu0 %v138
    %v259 = vpop.f32.mrf.mxu0
    %v260 = vadd.f32 0.0, %v259
    %v261 = vpop.f32.mrf.mxu0
    %262 = vmatprep.mubr.f32.mxu0 0.0
    %263 = vmatmul.mubr.f32.gmra.mxu0 %v141
    %v264 = vpop.f32.mrf.mxu0
    %v265 = vadd.f32 0.0, %v264
    %v266 = vpop.f32.mrf.mxu0
    %267 = vmatprep.mubr.f32.mxu0 0.0
    %268 = vmatmul.mubr.f32.gmra.mxu0 %v144
    %v269 = vpop.f32.mrf.mxu0
    %v270 = vadd.f32 0.0, %v269
    %v271 = vpop.f32.mrf.mxu0
    %272 = vmatprep.mubr.f32.mxu0 0.0
    %273 = vmatmul.mubr.f32.gmra.mxu0 %v147
    %v274 = vpop.f32.mrf.mxu0
    %v275 = vadd.f32 0.0, %v274
    %v276 = vpop.f32.mrf.mxu0
    %277 = vmatprep.mubr.f32.mxu0 0.0
    %278 = vmatmul.mubr.f32.gmra.mxu0 %v150
    %v279 = vpop.f32.mrf.mxu0
    %v280 = vadd.f32 0.0, %v279
    %v281 = vpop.f32.mrf.mxu0
    %282 = vmatprep.mubr.f32.mxu0 0.0
    %283 = vmatmul.mubr.f32.gmra.mxu0 %v153
    %v284 = vpop.f32.mrf.mxu0
    %v285 = vadd.f32 0.0, %v284
    %v286 = vpop.f32.mrf.mxu0
    %287 = vmatprep.mubr.f32.mxu0 0.0
    %288 = vmatmul.mubr.f32.gmra.mxu0 %v156
    %v289 = vpop.f32.mrf.mxu0
    %v290 = vadd.f32 0.0, %v289
    %v291 = vpop.f32.mrf.mxu0
    %292 = vmatprep.mubr.f32.mxu0 0.0
    %293 = vmatmul.mubr.f32.gmra.mxu0 %v159
    %v294 = vpop.f32.mrf.mxu0
    %v295 = vadd.f32 0.0, %v294
    %v296 = vpop.f32.mrf.mxu0
    %297 = vmatprep.mubr.f32.mxu0 0.0
    %298 = vmatmul.mubr.f32.gmra.mxu0 %v162
    %v299 = vpop.f32.mrf.mxu0
    %v300 = vadd.f32 0.0, %v299
    %v301 = vpop.f32.mrf.mxu0
    %302 = vmatprep.mubr.f32.mxu0 0.0
    %303 = vmatmul.mubr.f32.gmra.mxu0 %v165
    %v304 = vpop.f32.mrf.mxu0
    %v305 = vadd.f32 0.0, %v304
    %v306 = vpop.f32.mrf.mxu0
    %307 = vmatprep.mubr.f32.mxu0 0.0
    %308 = vmatmul.mubr.f32.gmra.mxu0 %v168
    %v309 = vpop.f32.mrf.mxu0
    %v310 = vadd.f32 0.0, %v309
    %v311 = vpop.f32.mrf.mxu0
    %312 = vmatprep.mubr.f32.mxu0 0.0
    %313 = vmatmul.mubr.f32.gmra.mxu0 %v171
    %v314 = vpop.f32.mrf.mxu0
    %v315 = vadd.f32 0.0, %v314
    %v316 = vpop.f32.mrf.mxu0
    %317 = vdwg.mxu0
    %v318 = vadd.f32 %v76, %v240
    %v319 = vadd.f32 %v77, %v245
    %v320 = vadd.f32 %v78, %v250
    %v321 = vadd.f32 %v79, %v255
    %v322 = vadd.f32 %v80, %v260
    %v323 = vadd.f32 %v81, %v265
    %v324 = vadd.f32 %v82, %v270
    %v325 = vadd.f32 %v83, %v275
    %v326 = vadd.f32 %v84, %v280
    %v327 = vadd.f32 %v85, %v285
    %v328 = vadd.f32 %v86, %v290
    %v329 = vadd.f32 %v87, %v295
    %v330 = vadd.f32 %v88, %v300
    %v331 = vadd.f32 %v89, %v305
    %v332 = vadd.f32 %v90, %v310
    %v333 = vadd.f32 %v91, %v315
    %334 = vst [vmem:[#allocation2] sm:$0xff] %v318
    %335 = vst [vmem:[#allocation2 + $0x8] sm:$0xff] %v319
    %336 = vst [vmem:[#allocation2 + $0x10] sm:$0xff] %v320
    %337 = vst [vmem:[#allocation2 + $0x18] sm:$0xff] %v321
    %338 = vst [vmem:[#allocation2 + $0x20] sm:$0xff] %v322
    %339 = vst [vmem:[#allocation2 + $0x28] sm:$0xff] %v323
    %340 = vst [vmem:[#allocation2 + $0x30] sm:$0xff] %v324
    %341 = vst [vmem:[#allocation2 + $0x38] sm:$0xff] %v325
    %342 = vst [vmem:[#allocation2 + $0x40] sm:$0xff] %v326
    %343 = vst [vmem:[#allocation2 + $0x48] sm:$0xff] %v327
    %344 = vst [vmem:[#allocation2 + $0x50] sm:$0xff] %v328
    %345 = vst [vmem:[#allocation2 + $0x58] sm:$0xff] %v329
    %346 = vst [vmem:[#allocation2 + $0x60] sm:$0xff] %v330
    %347 = vst [vmem:[#allocation2 + $0x68] sm:$0xff] %v331
    %348 = vst [vmem:[#allocation2 + $0x70] sm:$0xff] %v332
    %349 = vst [vmem:[#allocation2 + $0x78] sm:$0xff] %v333
    // Predicated region
    $region14: #{tpu_custom_call.1} parent=1 // pred_check
      _
    $region15: #{tpu_custom_call.1} parent=1 // pred_check_branch
      %351 = sbr.rel (0) target = $region17
    $region16: #{tpu_custom_call.1} parent=1 // pred_region
      %s353 = ssub.s32 2048, 2048
      %354 = vsyncadd [#allocation3], %s353
      %s355 = sshll.u32 [#allocation2], 4
      %s356 = int_to_ptr.vmem [resolvable:$true] %s355
      %361 = dma.vmem_to_hbm [thread:$0]  %s356, 2048, %s2, [#allocation3], 128, 128, 8
    $region17: #{tpu_custom_call.1} parent=1 // pred_fallthru
      _
    // Predicated region
    $region18: #{tpu_custom_call.1} parent=1 // pred_check
      _
    $region19: #{tpu_custom_call.1} parent=1 // pred_check_branch
      %363 = sbr.rel (0) target = $region21
    $region20: #{tpu_custom_call.1} parent=1 // pred_region
      %364 = dma.done [#allocation3], 2048
    $region21: #{tpu_custom_call.1} parent=1 // pred_fallthru
      _
    %365 = vsyncpa [#allocation3], 1

</llo_original>
